<compile_context>
chip_gen: v6e
topology: v6e:2x2x1
jax: 0.10.0
libtpu: 0.0.40
codegen_flags: <defaults>
</compile_context>

<pallas_src>
import functools

import jax
import jax.numpy as jnp
from jax.experimental import pallas as pl
from jax.experimental.pallas import tpu as pltpu


def _fasttext_lstm_kernel(x_ref, wg_ref, bg_ref, asc_ref, aoff_ref,
                          wfc_ref, bfc_ref, out_ref, *, hidden_dim):
    H = hidden_dim
    x = x_ref[...]                                                    # (bb, E)

    # Single fused MXU matmul for the (i, g, o) gates (g pre-scaled by 2).
    gates = jnp.dot(x, wg_ref[...],
                    preferred_element_type=jnp.float32) + bg_ref[...]  # (bb, 3H)

    # ONE sigmoid pass over the fused gate block (single EUP traversal), then
    # a VPU affine fixup:  i/o lanes -> s,  g lanes -> 2*s - 1 == tanh(z).
    s = jax.nn.sigmoid(gates)
    act = s * asc_ref[...] + aoff_ref[...]

    i = act[:, 0:H]
    g = act[:, H:2 * H]
    o = act[:, 2 * H:3 * H]

    c1 = i * g                       # f * c0 == 0, forget gate never needed
    h1 = o * jnp.tanh(c1)            # (bb, H)

    # Final linear layer, unpadded (bb, O) store.
    out = jnp.dot(h1, wfc_ref[...],
                  preferred_element_type=jnp.float32) + bfc_ref[...]
    out_ref[...] = out.astype(out_ref.dtype)


def prepare_params(params):
    """One-time re-layout of PyTorch-style LSTM + Linear parameters."""
    w_ih = params["w_ih"]                      # (4H, E), PyTorch gate order i,f,g,o
    b = params["b_ih"] + params["b_hh"]        # (4H,)
    H4, E = w_ih.shape
    H = H4 // 4
    w_fc = params["w_fc"]                      # (O, H)
    b_fc = params["b_fc"]                      # (O,)
    O = w_fc.shape[0]

    # Keep only the live gates (i, g, o); forget gate multiplies c0 == 0.
    # Pre-scale the g gate by 2 so tanh(z) = 2*sigmoid(2z) - 1 can be recovered
    # from a single fused sigmoid pass plus a post-sigmoid affine fixup.
    keep = (0, 2, 3)                 # i, g, o rows of the PyTorch weight
    pre_scale = (1.0, 2.0, 1.0)      # scale applied BEFORE the nonlinearity
    w_gates = jnp.concatenate(
        [s * jnp.transpose(w_ih[k * H:(k + 1) * H, :])
         for k, s in zip(keep, pre_scale)], axis=1).astype(jnp.float32)   # (E, 3H)
    b_gates = jnp.concatenate(
        [s * b[k * H:(k + 1) * H]
         for k, s in zip(keep, pre_scale)]).reshape(1, 3 * H).astype(jnp.float32)

    # Post-sigmoid affine fixup rows: i/o lanes -> (1, 0);  g lanes -> (2, -1).
    act_scale = jnp.concatenate(
        [jnp.ones((H,)), jnp.full((H,), 2.0), jnp.ones((H,))]
    ).reshape(1, 3 * H).astype(jnp.float32)
    act_offset = jnp.concatenate(
        [jnp.zeros((H,)), jnp.full((H,), -1.0), jnp.zeros((H,))]
    ).reshape(1, 3 * H).astype(jnp.float32)

    wfc_t = jnp.transpose(w_fc).astype(jnp.float32)        # (H, O), no padding
    bfc = b_fc.reshape(1, O).astype(jnp.float32)           # (1, O)

    return {"w_gates": w_gates, "b_gates": b_gates,
            "act_scale": act_scale, "act_offset": act_offset,
            "wfc_t": wfc_t, "bfc": bfc,
            "E": E, "H": H, "O": O}


def _choose_batch_block(B, batch_block):
    """Batch tile: multiple of 8 (sublane), <= batch_block, >= 2 grid steps
    for moderate B so the 'parallel' axis shards across v7x's two TCs."""
    if B <= 8:
        return B                                   # single tiny block, full dim
    half = ((pl.cdiv(B, 2) + 7) // 8) * 8          # round_up8(cdiv(B, 2))
    return max(8, min(batch_block, half))


def fasttext_lstm_forward(x, prep, *, batch_block=1024):
    """x: (B, E) float32.  prep: output of prepare_params()."""
    B, E = x.shape
    H, O = prep["H"], prep["O"]
    G = 3 * H

    bb = _choose_batch_block(B, batch_block)
    grid = (pl.cdiv(B, bb),)         # ragged last tile is fine: row-wise kernel

    kernel = functools.partial(_fasttext_lstm_kernel, hidden_dim=H)

    out = pl.pallas_call(
        kernel,
        out_shape=jax.ShapeDtypeStruct((B, O), jnp.float32),
        grid=grid,
        in_specs=[
            pl.BlockSpec((bb, E), lambda i: (i, 0)),    # x (batch-tiled stream)
            pl.BlockSpec((E, G), lambda i: (0, 0)),     # fused gate weight
            pl.BlockSpec((1, G), lambda i: (0, 0)),     # fused gate bias
            pl.BlockSpec((1, G), lambda i: (0, 0)),     # post-sigmoid scale row
            pl.BlockSpec((1, G), lambda i: (0, 0)),     # post-sigmoid offset row
            pl.BlockSpec((H, O), lambda i: (0, 0)),     # fc weight (H, O)
            pl.BlockSpec((1, O), lambda i: (0, 0)),     # fc bias
        ],
        out_specs=pl.BlockSpec((bb, O), lambda i: (i, 0)),
        compiler_params=pltpu.CompilerParams(
            dimension_semantics=("parallel",)),
    )(x, prep["w_gates"], prep["b_gates"], prep["act_scale"],
      prep["act_offset"], prep["wfc_t"], prep["bfc"])

    return out


def _reference_forward(x, params):
    """Pure-JAX reference matching PyTorch nn.LSTM (1 step) + nn.Linear."""
    H = params["w_fc"].shape[1]
    gates = x @ params["w_ih"].T + params["b_ih"] + params["b_hh"]
    gi, gf, gg, go = (gates[:, k * H:(k + 1) * H] for k in range(4))
    i, f, g, o = (jax.nn.sigmoid(gi), jax.nn.sigmoid(gf),
                  jnp.tanh(gg), jax.nn.sigmoid(go))
    c1 = i * g                     # c0 == 0
    h1 = o * jnp.tanh(c1)
    return h1 @ params["w_fc"].T + params["b_fc"]


if __name__ == "__main__":
    # Small shapes consistent with the module (fasttext cc.hi.300 -> E=300).
    B, E, H, O = 8, 300, 32, 4     # batch, embedding_dim, hidden_dim, output_dim

    key = jax.random.PRNGKey(0)
    ks = jax.random.split(key, 8)
    scale = 0.1
    params = {
        "w_ih": scale * jax.random.normal(ks[0], (4 * H, E), jnp.float32),
        "w_hh": scale * jax.random.normal(ks[1], (4 * H, H), jnp.float32),  # unused: h0 == 0
        "b_ih": scale * jax.random.normal(ks[2], (4 * H,), jnp.float32),
        "b_hh": scale * jax.random.normal(ks[3], (4 * H,), jnp.float32),
        "w_fc": scale * jax.random.normal(ks[4], (O, H), jnp.float32),
        "b_fc": scale * jax.random.normal(ks[5], (O,), jnp.float32),
    }
    x = jax.random.normal(ks[6], (B, E), jnp.float32)

    prep = prepare_params(params)          # one-time weight re-layout (not per call)
    out = jax.block_until_ready(fasttext_lstm_forward(x, prep))
    ref = jax.block_until_ready(_reference_forward(x, params))

    assert out.shape == (B, O)
    assert jnp.allclose(out, ref, atol=1e-4, rtol=1e-4), "mismatch vs reference"
    print("KERNEL_OK")
</pallas_src>

<mosaic_0001>
module attributes {stable_mosaic.version = 11 : i64} {
  func.func @_fasttext_lstm_kernel(%arg0: i32, %arg1: memref<8x300xf32, #tpu.memory_space<vmem>>, %arg2: memref<300x96xf32, #tpu.memory_space<vmem>>, %arg3: memref<1x96xf32, #tpu.memory_space<vmem>>, %arg4: memref<1x96xf32, #tpu.memory_space<vmem>>, %arg5: memref<1x96xf32, #tpu.memory_space<vmem>>, %arg6: memref<32x4xf32, #tpu.memory_space<vmem>>, %arg7: memref<1x4xf32, #tpu.memory_space<vmem>>, %arg8: memref<8x4xf32, #tpu.memory_space<vmem>>) attributes {dimension_semantics = [#tpu.dimension_semantics<parallel>], iteration_bounds = array<i64: 1>, scalar_prefetch = 0 : i64, scratch_operands = 0 : i64, tpu.core_type = #tpu.core_type<tc>, window_params = [{transform_indices = @transform_0, window_bounds = array<i64: 8, 300>}, {pipeline_mode = #tpu.pipeline_mode<synchronous>, transform_indices = @transform_1, window_bounds = array<i64: 300, 96>}, {pipeline_mode = #tpu.pipeline_mode<synchronous>, transform_indices = @transform_2, window_bounds = array<i64: 1, 96>}, {pipeline_mode = #tpu.pipeline_mode<synchronous>, transform_indices = @transform_3, window_bounds = array<i64: 1, 96>}, {pipeline_mode = #tpu.pipeline_mode<synchronous>, transform_indices = @transform_4, window_bounds = array<i64: 1, 96>}, {pipeline_mode = #tpu.pipeline_mode<synchronous>, transform_indices = @transform_5, window_bounds = array<i64: 32, 4>}, {pipeline_mode = #tpu.pipeline_mode<synchronous>, transform_indices = @transform_6, window_bounds = array<i64: 1, 4>}, {transform_indices = @transform_7, window_bounds = array<i64: 8, 4>}]} {
    %c0 = arith.constant 0 : index
    %c0_0 = arith.constant 0 : index
    %0 = vector.load %arg1[%c0, %c0_0] : memref<8x300xf32, #tpu.memory_space<vmem>>, vector<8x300xf32>
    %c0_1 = arith.constant 0 : index
    %c0_2 = arith.constant 0 : index
    %1 = vector.load %arg2[%c0_1, %c0_2] : memref<300x96xf32, #tpu.memory_space<vmem>>, vector<300x96xf32>
    %cst = arith.constant dense<0.000000e+00> : vector<8x96xf32>
    %2 = tpu.matmul %0, %1, %cst {dimension_numbers = #tpu.dot_dimension_numbers<[1], [0], [0], [1], [0, 0, 1, 1], [], []>} : vector<8x300xf32>, vector<300x96xf32>, vector<8x96xf32> -> vector<8x96xf32>
    %c0_3 = arith.constant 0 : index
    %c0_4 = arith.constant 0 : index
    %3 = vector.load %arg3[%c0_3, %c0_4] : memref<1x96xf32, #tpu.memory_space<vmem>>, vector<1x96xf32>
    %4 = vector.broadcast %3 : vector<1x96xf32> to vector<8x96xf32>
    %5 = arith.addf %2, %4 : vector<8x96xf32>
    %6 = arith.negf %5 : vector<8x96xf32>
    %7 = math.exp %6 : vector<8x96xf32>
    %cst_5 = arith.constant 1.000000e+00 : f32
    %8 = vector.broadcast %cst_5 : f32 to vector<8x96xf32>
    %9 = arith.addf %8, %7 : vector<8x96xf32>
    %10 = arith.divf %8, %9 : vector<8x96xf32>
    %c0_6 = arith.constant 0 : index
    %c0_7 = arith.constant 0 : index
    %11 = vector.load %arg4[%c0_6, %c0_7] : memref<1x96xf32, #tpu.memory_space<vmem>>, vector<1x96xf32>
    %12 = vector.broadcast %11 : vector<1x96xf32> to vector<8x96xf32>
    %13 = arith.mulf %10, %12 : vector<8x96xf32>
    %c0_8 = arith.constant 0 : index
    %c0_9 = arith.constant 0 : index
    %14 = vector.load %arg5[%c0_8, %c0_9] : memref<1x96xf32, #tpu.memory_space<vmem>>, vector<1x96xf32>
    %15 = vector.broadcast %14 : vector<1x96xf32> to vector<8x96xf32>
    %16 = arith.addf %13, %15 : vector<8x96xf32>
    %17 = vector.extract_strided_slice %16 {offsets = [0, 0], sizes = [8, 32], strides = [1, 1]} : vector<8x96xf32> to vector<8x32xf32>
    %18 = vector.extract_strided_slice %16 {offsets = [0, 32], sizes = [8, 32], strides = [1, 1]} : vector<8x96xf32> to vector<8x32xf32>
    %19 = vector.extract_strided_slice %16 {offsets = [0, 64], sizes = [8, 32], strides = [1, 1]} : vector<8x96xf32> to vector<8x32xf32>
    %20 = arith.mulf %17, %18 : vector<8x32xf32>
    %21 = math.tanh %20 : vector<8x32xf32>
    %22 = arith.mulf %19, %21 : vector<8x32xf32>
    %c0_10 = arith.constant 0 : index
    %c0_11 = arith.constant 0 : index
    %23 = vector.load %arg6[%c0_10, %c0_11] : memref<32x4xf32, #tpu.memory_space<vmem>>, vector<32x4xf32>
    %cst_12 = arith.constant dense<0.000000e+00> : vector<8x4xf32>
    %24 = tpu.matmul %22, %23, %cst_12 {dimension_numbers = #tpu.dot_dimension_numbers<[1], [0], [0], [1], [0, 0, 1, 1], [], []>} : vector<8x32xf32>, vector<32x4xf32>, vector<8x4xf32> -> vector<8x4xf32>
    %c0_13 = arith.constant 0 : index
    %c0_14 = arith.constant 0 : index
    %25 = vector.load %arg7[%c0_13, %c0_14] : memref<1x4xf32, #tpu.memory_space<vmem>>, vector<1x4xf32>
    %26 = vector.broadcast %25 : vector<1x4xf32> to vector<8x4xf32>
    %27 = arith.addf %24, %26 : vector<8x4xf32>
    %c0_15 = arith.constant 0 : index
    %c0_16 = arith.constant 0 : index
    %28 = vector.load %arg8[%c0_15, %c0_16] : memref<8x4xf32, #tpu.memory_space<vmem>>, vector<8x4xf32>
    tpu.vector_store %arg8[%c0_15, %c0_16], %27 {strides = array<i32>} : memref<8x4xf32, #tpu.memory_space<vmem>>, vector<8x4xf32>,
    return
  }
  func.func @transform_0(%arg0: i32) -> (i32, i32) {
    %c0_i32 = arith.constant 0 : i32
    %c0_i32_0 = arith.constant 0 : i32
    return %arg0, %c0_i32 : i32, i32
  }
  func.func @transform_1(%arg0: i32) -> (i32, i32) {
    %c0_i32 = arith.constant 0 : i32
    %c0_i32_0 = arith.constant 0 : i32
    %c0_i32_1 = arith.constant 0 : i32
    return %c0_i32, %c0_i32_0 : i32, i32
  }
  func.func @transform_2(%arg0: i32) -> (i32, i32) {
    %c0_i32 = arith.constant 0 : i32
    %c0_i32_0 = arith.constant 0 : i32
    %c0_i32_1 = arith.constant 0 : i32
    return %c0_i32, %c0_i32_0 : i32, i32
  }
  func.func @transform_3(%arg0: i32) -> (i32, i32) {
    %c0_i32 = arith.constant 0 : i32
    %c0_i32_0 = arith.constant 0 : i32
    %c0_i32_1 = arith.constant 0 : i32
    return %c0_i32, %c0_i32_0 : i32, i32
  }
  func.func @transform_4(%arg0: i32) -> (i32, i32) {
    %c0_i32 = arith.constant 0 : i32
    %c0_i32_0 = arith.constant 0 : i32
    %c0_i32_1 = arith.constant 0 : i32
    return %c0_i32, %c0_i32_0 : i32, i32
  }
  func.func @transform_5(%arg0: i32) -> (i32, i32) {
    %c0_i32 = arith.constant 0 : i32
    %c0_i32_0 = arith.constant 0 : i32
    %c0_i32_1 = arith.constant 0 : i32
    return %c0_i32, %c0_i32_0 : i32, i32
  }
  func.func @transform_6(%arg0: i32) -> (i32, i32) {
    %c0_i32 = arith.constant 0 : i32
    %c0_i32_0 = arith.constant 0 : i32
    %c0_i32_1 = arith.constant 0 : i32
    return %c0_i32, %c0_i32_0 : i32, i32
  }
  func.func @transform_7(%arg0: i32) -> (i32, i32) {
    %c0_i32 = arith.constant 0 : i32
    %c0_i32_0 = arith.constant 0 : i32
    return %arg0, %c0_i32 : i32, i32
  }
}

</mosaic_0001>

<llo_original>
// kernel: tpu_custom_call.1
$region0: #{tpu_custom_call.1}
  #allocation0 [shape = 'u32[]', space=smem, size = 0x4, offset = 0x4, fixed_abs, tag = 'smem constant byte address 0x4 - core index']
  #allocation1 [shape = 'u32[144,128]{1,0:T(1,128)}', space=vmem, size = 0x12000, scoped, tag = 'internal scratch']
  %s0 = inlined_call_operand.vmem [shape: f32[8,300], index: 0, kind: input, shape index: {}]
  %s1 = inlined_call_operand.vmem [shape: f32[300,96], index: 1, kind: input, shape index: {}]
  %s2 = inlined_call_operand.vmem [shape: f32[1,96], index: 2, kind: input, shape index: {}]
  %s3 = inlined_call_operand.vmem [shape: f32[1,96], index: 3, kind: input, shape index: {}]
  %s4 = inlined_call_operand.vmem [shape: f32[1,96], index: 4, kind: input, shape index: {}]
  %s5 = inlined_call_operand.vmem [shape: f32[32,4], index: 5, kind: input, shape index: {}]
  %s6 = inlined_call_operand.vmem [shape: f32[1,4], index: 6, kind: input, shape index: {}]
  %s7 = inlined_call_operand.vmem [shape: f32[8,4], index: 7, kind: output, shape index: {}]
  %s8 = sld [smem:[#allocation0]]
  $region38: #{tpu_custom_call.1} parent=0
    _
  %s10 = ssub.s32 1, %s8
  %s11 = scalar_select 0, %s10, %s8
  // Predicated region
  $region2: #{tpu_custom_call.1} parent=0 // pred_check
    _
  $region3: #{tpu_custom_call.1} parent=0 // pred_check_branch
    %13 = sbr.rel (0) target = $region5
  $region4: #{tpu_custom_call.1} parent=0 // pred_region
    _
  $region5: #{tpu_custom_call.1} parent=0 // pred_fallthru
    _
  // Predicated region
  $region6: #{tpu_custom_call.1} parent=0 // pred_check
    _
  $region7: #{tpu_custom_call.1} parent=0 // pred_check_branch
    %15 = sbr.rel (0) target = $region9
  $region8: #{tpu_custom_call.1} parent=0 // pred_region
    _
  $region9: #{tpu_custom_call.1} parent=0 // pred_fallthru
    _
  // Predicated region
  $region10: #{tpu_custom_call.1} parent=0 // pred_check
    _
  $region11: #{tpu_custom_call.1} parent=0 // pred_check_branch
    %17 = sbr.rel (0) target = $region13
  $region12: #{tpu_custom_call.1} parent=0 // pred_region
    _
  $region13: #{tpu_custom_call.1} parent=0 // pred_fallthru
    _
  // Predicated region
  $region14: #{tpu_custom_call.1} parent=0 // pred_check
    _
  $region15: #{tpu_custom_call.1} parent=0 // pred_check_branch
    %19 = sbr.rel (0) target = $region17
  $region16: #{tpu_custom_call.1} parent=0 // pred_region
    _
  $region17: #{tpu_custom_call.1} parent=0 // pred_fallthru
    _
  // Predicated region
  $region18: #{tpu_custom_call.1} parent=0 // pred_check
    _
  $region19: #{tpu_custom_call.1} parent=0 // pred_check_branch
    %21 = sbr.rel (0) target = $region21
  $region20: #{tpu_custom_call.1} parent=0 // pred_region
    _
  $region21: #{tpu_custom_call.1} parent=0 // pred_fallthru
    _
  // Predicated region
  $region22: #{tpu_custom_call.1} parent=0 // pred_check
    _
  $region23: #{tpu_custom_call.1} parent=0 // pred_check_branch
    %23 = sbr.rel (0) target = $region25
  $region24: #{tpu_custom_call.1} parent=0 // pred_region
    _
  $region25: #{tpu_custom_call.1} parent=0 // pred_fallthru
    _
  // Predicated region
  $region26: #{tpu_custom_call.1} parent=0 // pred_check
    _
  $region27: #{tpu_custom_call.1} parent=0 // pred_check_branch
    %25 = sbr.rel (0) target = $region29
  $region28: #{tpu_custom_call.1} parent=0 // pred_region
    _
  $region29: #{tpu_custom_call.1} parent=0 // pred_fallthru
    _
  %v26 = vld [vmem:[%s0] sm:$0xff]
  %v27 = vld [vmem:[%s0 + $0x8] sm:$0xff]
  %v28 = vld [vmem:[%s0 + $0x10] sm:$0xff]
  %v29 = vld [vmem:[%s1] sm:$0xff]
  %v30 = vld [vmem:[%s1 + $0x8] sm:$0xff]
  %v31 = vld [vmem:[%s1 + $0x10] sm:$0xff]
  %v32 = vld [vmem:[%s1 + $0x18] sm:$0xff]
  %v33 = vld [vmem:[%s1 + $0x20] sm:$0xff]
  %v34 = vld [vmem:[%s1 + $0x28] sm:$0xff]
  %v35 = vld [vmem:[%s1 + $0x30] sm:$0xff]
  %v36 = vld [vmem:[%s1 + $0x38] sm:$0xff]
  %v37 = vld [vmem:[%s1 + $0x40] sm:$0xff]
  %v38 = vld [vmem:[%s1 + $0x48] sm:$0xff]
  %v39 = vld [vmem:[%s1 + $0x50] sm:$0xff]
  %v40 = vld [vmem:[%s1 + $0x58] sm:$0xff]
  %v41 = vld [vmem:[%s1 + $0x60] sm:$0xff]
  %v42 = vld [vmem:[%s1 + $0x68] sm:$0xff]
  %v43 = vld [vmem:[%s1 + $0x70] sm:$0xff]
  %v44 = vld [vmem:[%s1 + $0x78] sm:$0xff]
  %v45 = vld [vmem:[%s1 + $0x80] sm:$0xff]
  %v46 = vld [vmem:[%s1 + $0x88] sm:$0xff]
  %v47 = vld [vmem:[%s1 + $0x90] sm:$0xff]
  %v48 = vld [vmem:[%s1 + $0x98] sm:$0xff]
  %v49 = vld [vmem:[%s1 + $0xa0] sm:$0xff]
  %v50 = vld [vmem:[%s1 + $0xa8] sm:$0xff]
  %v51 = vld [vmem:[%s1 + $0xb0] sm:$0xff]
  %v52 = vld [vmem:[%s1 + $0xb8] sm:$0xff]
  %v53 = vld [vmem:[%s1 + $0xc0] sm:$0xff]
  %v54 = vld [vmem:[%s1 + $0xc8] sm:$0xff]
  %v55 = vld [vmem:[%s1 + $0xd0] sm:$0xff]
  %v56 = vld [vmem:[%s1 + $0xd8] sm:$0xff]
  %v57 = vld [vmem:[%s1 + $0xe0] sm:$0xff]
  %v58 = vld [vmem:[%s1 + $0xe8] sm:$0xff]
  %v59 = vld [vmem:[%s1 + $0xf0] sm:$0xff]
  %v60 = vld [vmem:[%s1 + $0xf8] sm:$0xff]
  %v61 = vld [vmem:[%s1 + $0x100] sm:$0xff]
  %v62 = vld [vmem:[%s1 + $0x108] sm:$0xff]
  %v63 = vld [vmem:[%s1 + $0x110] sm:$0xff]
  %v64 = vld [vmem:[%s1 + $0x118] sm:$0xff]
  %v65 = vld [vmem:[%s1 + $0x120] sm:$0xff]
  %v66 = vld [vmem:[%s1 + $0x128] sm:$0xf]
  %v67 = vld [vmem:[%s2] sm:$0x1]
  %v69 = vlaneseq
  %v70 = vshrl.u32 %v69, 7
  %v71 = vsub.s32 0, %v70
  %v72 = vrot.slane %v67, %v71
  %vm74 = vcmask 359424
  %v76 = vsel %vm74, %v28, 0
  %vm78 = vcmask 1043456
  %v80 = vsel %vm78, %v66, 0
  %82 = vmatprep.subr.mxu0 0.0
  %83 = vmatpush1.msra.mxu0 %v44
  %84 = vmatprep.subr.mxu0 0.0
  %85 = vmatpush1.msra.mxu0 %v43
  %86 = vmatprep.subr.mxu0 0.0
  %87 = vmatpush1.msra.mxu0 %v42
  %88 = vmatprep.subr.mxu0 0.0
  %89 = vmatpush1.msra.mxu0 %v41
  %90 = vmatprep.subr.mxu0 0.0
  %91 = vmatpush1.msra.mxu0 %v40
  %92 = vmatprep.subr.mxu0 0.0
  %93 = vmatpush1.msra.mxu0 %v39
  %94 = vmatprep.subr.mxu0 0.0
  %95 = vmatpush1.msra.mxu0 %v38
  %96 = vmatprep.subr.mxu0 0.0
  %97 = vmatpush1.msra.mxu0 %v37
  %98 = vmatprep.subr.mxu0 0.0
  %99 = vmatpush1.msra.mxu0 %v36
  %100 = vmatprep.subr.mxu0 0.0
  %101 = vmatpush1.msra.mxu0 %v35
  %102 = vmatprep.subr.mxu0 0.0
  %103 = vmatpush1.msra.mxu0 %v34
  %104 = vmatprep.subr.mxu0 0.0
  %105 = vmatpush1.msra.mxu0 %v33
  %106 = vmatprep.subr.mxu0 0.0
  %107 = vmatpush1.msra.mxu0 %v32
  %108 = vmatprep.subr.mxu0 0.0
  %109 = vmatpush1.msra.mxu0 %v31
  %110 = vmatprep.subr.mxu0 0.0
  %111 = vmatpush1.msra.mxu0 %v30
  %112 = vmatprep.subr.mxu0 0.0
  %113 = vmatpush1.msra.mxu0 %v29
  %114 = vmatprep.subr.mxu0 0.0
  %115 = vmatpush2.msra.mxu0 %v60
  %116 = vmatprep.subr.mxu0 0.0
  %117 = vmatpush2.msra.mxu0 %v59
  %118 = vmatprep.subr.mxu0 0.0
  %119 = vmatpush2.msra.mxu0 %v58
  %120 = vmatprep.subr.mxu0 0.0
  %121 = vmatpush2.msra.mxu0 %v57
  %122 = vmatprep.subr.mxu0 0.0
  %123 = vmatpush2.msra.mxu0 %v56
  %124 = vmatprep.subr.mxu0 0.0
  %125 = vmatpush2.msra.mxu0 %v55
  %126 = vmatprep.subr.mxu0 0.0
  %127 = vmatpush2.msra.mxu0 %v54
  %128 = vmatprep.subr.mxu0 0.0
  %129 = vmatpush2.msra.mxu0 %v53
  %130 = vmatprep.subr.mxu0 0.0
  %131 = vmatpush2.msra.mxu0 %v52
  %132 = vmatprep.subr.mxu0 0.0
  %133 = vmatpush2.msra.mxu0 %v51
  %134 = vmatprep.subr.mxu0 0.0
  %135 = vmatpush2.msra.mxu0 %v50
  %136 = vmatprep.subr.mxu0 0.0
  %137 = vmatpush2.msra.mxu0 %v49
  %138 = vmatprep.subr.mxu0 0.0
  %139 = vmatpush2.msra.mxu0 %v48
  %140 = vmatprep.subr.mxu0 0.0
  %141 = vmatpush2.msra.mxu0 %v47
  %142 = vmatprep.subr.mxu0 0.0
  %143 = vmatpush2.msra.mxu0 %v46
  %144 = vmatprep.subr.mxu0 0.0
  %145 = vmatpush2.msra.mxu0 %v45
  %146 = vmatprep.mubr.f32.mxu0 %v27
  %147 = vmatmul.mubr.f32.gmra.mxu0 %v26
  %v148 = vpop.f32.mrf.mxu0
  %v149 = vadd.f32 %v72, %v148
  %v150 = vpop.f32.mrf.mxu0
  %151 = vdwg.mxu0
  %152 = vmatprep.subr.mxu0 0.0
  %153 = vmatpush1.msra.mxu0 0.0
  %154 = vmatprep.subr.mxu0 0.0
  %155 = vmatpush1.msra.mxu0 0.0
  %156 = vmatprep.subr.mxu0 0.0
  %157 = vmatpush1.msra.mxu0 0.0
  %158 = vmatprep.subr.mxu0 0.0
  %159 = vmatpush1.msra.mxu0 0.0
  %160 = vmatprep.subr.mxu0 0.0
  %161 = vmatpush1.msra.mxu0 0.0
  %162 = vmatprep.subr.mxu0 0.0
  %163 = vmatpush1.msra.mxu0 0.0
  %164 = vmatprep.subr.mxu0 0.0
  %165 = vmatpush1.msra.mxu0 0.0
  %166 = vmatprep.subr.mxu0 0.0
  %167 = vmatpush1.msra.mxu0 0.0
  %168 = vmatprep.subr.mxu0 0.0
  %169 = vmatpush1.msra.mxu0 0.0
  %170 = vmatprep.subr.mxu0 0.0
  %171 = vmatpush1.msra.mxu0 0.0
  %172 = vmatprep.subr.mxu0 0.0
  %173 = vmatpush1.msra.mxu0 %v80
  %174 = vmatprep.subr.mxu0 0.0
  %175 = vmatpush1.msra.mxu0 %v65
  %176 = vmatprep.subr.mxu0 0.0
  %177 = vmatpush1.msra.mxu0 %v64
  %178 = vmatprep.subr.mxu0 0.0
  %179 = vmatpush1.msra.mxu0 %v63
  %180 = vmatprep.subr.mxu0 0.0
  %181 = vmatpush1.msra.mxu0 %v62
  %182 = vmatprep.subr.mxu0 0.0
  %183 = vmatpush1.msra.mxu0 %v61
  %184 = vmatprep.subr.mxu0 0.0
  %185 = vmatpush2.msra.mxu0 0.0
  %186 = vmatprep.subr.mxu0 0.0
  %187 = vmatpush2.msra.mxu0 0.0
  %188 = vmatprep.subr.mxu0 0.0
  %189 = vmatpush2.msra.mxu0 0.0
  %190 = vmatprep.subr.mxu0 0.0
  %191 = vmatpush2.msra.mxu0 0.0
  %192 = vmatprep.subr.mxu0 0.0
  %193 = vmatpush2.msra.mxu0 0.0
  %194 = vmatprep.subr.mxu0 0.0
  %195 = vmatpush2.msra.mxu0 0.0
  %196 = vmatprep.subr.mxu0 0.0
  %197 = vmatpush2.msra.mxu0 0.0
  %198 = vmatprep.subr.mxu0 0.0
  %199 = vmatpush2.msra.mxu0 0.0
  %200 = vmatprep.subr.mxu0 0.0
  %201 = vmatpush2.msra.mxu0 0.0
  %202 = vmatprep.subr.mxu0 0.0
  %203 = vmatpush2.msra.mxu0 0.0
  %204 = vmatprep.subr.mxu0 0.0
  %205 = vmatpush2.msra.mxu0 0.0
  %206 = vmatprep.subr.mxu0 0.0
  %207 = vmatpush2.msra.mxu0 0.0
  %208 = vmatprep.subr.mxu0 0.0
  %209 = vmatpush2.msra.mxu0 0.0
  %210 = vmatprep.subr.mxu0 0.0
  %211 = vmatpush2.msra.mxu0 0.0
  %212 = vmatprep.subr.mxu0 0.0
  %213 = vmatpush2.msra.mxu0 0.0
  %214 = vmatprep.subr.mxu0 0.0
  %215 = vmatpush2.msra.mxu0 0.0
  %216 = vmatprep.mubr.f32.mxu0 0.0
  %217 = vmatmul.mubr.f32.gmra.mxu0 %v76
  %v218 = vpop.f32.mrf.mxu0
  %v219 = vadd.f32 %v149, %v218
  %v220 = vpop.f32.mrf.mxu0
  %221 = vdwg.mxu0
  %v222 = vxor.u32 %v219, 2147483648
  %v223 = vmul.f32 %v222, 1.442695
  %v224 = vpow.pop %v223
  %v225 = vadd.f32 %v224, 1.0
  %v226 = vrcp.pop %v225
  %v227 = vmul.f32 1.0, %v226
  %v228 = vld [vmem:[%s3] sm:$0x1]
  %v230 = vlaneseq
  %v231 = vshrl.u32 %v230, 7
  %v232 = vsub.s32 0, %v231
  %v233 = vrot.slane %v228, %v232
  %v235 = vmul.f32 %v227, %v233
  %v236 = vld [vmem:[%s4] sm:$0x1]
  %v238 = vlaneseq
  %v239 = vshrl.u32 %v238, 7
  %v240 = vsub.s32 0, %v239
  %v241 = vrot.slane %v236, %v240
  %v243 = vadd.f32 %v235, %v241
  %245 = vrot.lane.b32.xlu0 %v243, 96
  %v246 = vpop.permute.xlu0 %245
  %v248 = vmul.f32 %v243, %v246
  %v249 = vtanh.pop %v248
  %251 = vrot.lane.b32.xlu0 %v249, 64
  %v252 = vpop.permute.xlu0 %251
  %v254 = vmul.f32 %v243, %v252
  %v255 = vld [vmem:[%s5] sm:$0xff]
  %v256 = vld [vmem:[%s5 + $0x8] sm:$0xff]
  %v257 = vld [vmem:[%s5 + $0x10] sm:$0xff]
  %v258 = vld [vmem:[%s5 + $0x18] sm:$0xff]
  %v259 = vld [vmem:[%s6] sm:$0x1]
  %v261 = vlaneseq
  %v262 = vshrl.u32 %v261, 7
  %v263 = vsub.s32 0, %v262
  %v264 = vrot.slane %v259, %v263
  %267 = vrot.lane.b32.xlu0 %v254, 64
  %v268 = vpop.permute.xlu0 %267
  %vm269 = vcmask 261120
  %v270 = vsel %vm269, %v268, 0
  %272 = vmatprep.subr.mxu0 0.0
  %273 = vmatpush1.msra.mxu0 0.0
  %274 = vmatprep.subr.mxu0 0.0
  %275 = vmatpush1.msra.mxu0 0.0
  %276 = vmatprep.subr.mxu0 0.0
  %277 = vmatpush1.msra.mxu0 0.0
  %278 = vmatprep.subr.mxu0 0.0
  %279 = vmatpush1.msra.mxu0 0.0
  %280 = vmatprep.subr.mxu0 0.0
  %281 = vmatpush1.msra.mxu0 0.0
  %282 = vmatprep.subr.mxu0 0.0
  %283 = vmatpush1.msra.mxu0 0.0
  %284 = vmatprep.subr.mxu0 0.0
  %285 = vmatpush1.msra.mxu0 0.0
  %286 = vmatprep.subr.mxu0 0.0
  %287 = vmatpush1.msra.mxu0 0.0
  %288 = vmatprep.subr.mxu0 0.0
  %289 = vmatpush1.msra.mxu0 0.0
  %290 = vmatprep.subr.mxu0 0.0
  %291 = vmatpush1.msra.mxu0 0.0
  %292 = vmatprep.subr.mxu0 0.0
  %293 = vmatpush1.msra.mxu0 0.0
  %294 = vmatprep.subr.mxu0 0.0
  %295 = vmatpush1.msra.mxu0 0.0
  %296 = vmatprep.subr.mxu0 0.0
  %297 = vmatpush1.msra.mxu0 %v258
  %298 = vmatprep.subr.mxu0 0.0
  %299 = vmatpush1.msra.mxu0 %v257
  %300 = vmatprep.subr.mxu0 0.0
  %301 = vmatpush1.msra.mxu0 %v256
  %302 = vmatprep.subr.mxu0 0.0
  %303 = vmatpush1.msra.mxu0 %v255
  %304 = vmatprep.subr.mxu0 0.0
  %305 = vmatpush2.msra.mxu0 0.0
  %306 = vmatprep.subr.mxu0 0.0
  %307 = vmatpush2.msra.mxu0 0.0
  %308 = vmatprep.subr.mxu0 0.0
  %309 = vmatpush2.msra.mxu0 0.0
  %310 = vmatprep.subr.mxu0 0.0
  %311 = vmatpush2.msra.mxu0 0.0
  %312 = vmatprep.subr.mxu0 0.0
  %313 = vmatpush2.msra.mxu0 0.0
  %314 = vmatprep.subr.mxu0 0.0
  %315 = vmatpush2.msra.mxu0 0.0
  %316 = vmatprep.subr.mxu0 0.0
  %317 = vmatpush2.msra.mxu0 0.0
  %318 = vmatprep.subr.mxu0 0.0
  %319 = vmatpush2.msra.mxu0 0.0
  %320 = vmatprep.subr.mxu0 0.0
  %321 = vmatpush2.msra.mxu0 0.0
  %322 = vmatprep.subr.mxu0 0.0
  %323 = vmatpush2.msra.mxu0 0.0
  %324 = vmatprep.subr.mxu0 0.0
  %325 = vmatpush2.msra.mxu0 0.0
  %326 = vmatprep.subr.mxu0 0.0
  %327 = vmatpush2.msra.mxu0 0.0
  %328 = vmatprep.subr.mxu0 0.0
  %329 = vmatpush2.msra.mxu0 0.0
  %330 = vmatprep.subr.mxu0 0.0
  %331 = vmatpush2.msra.mxu0 0.0
  %332 = vmatprep.subr.mxu0 0.0
  %333 = vmatpush2.msra.mxu0 0.0
  %334 = vmatprep.subr.mxu0 0.0
  %335 = vmatpush2.msra.mxu0 0.0
  %336 = vmatprep.mubr.f32.mxu0 0.0
  %337 = vmatmul.mubr.f32.gmra.mxu0 %v270
  %v338 = vpop.f32.mrf.mxu0
  %v339 = vadd.f32 %v264, %v338
  %v340 = vpop.f32.mrf.mxu0
  %341 = vdwg.mxu0
  %vm342 = vcmask 31744
  %343 = vst.msk [vmem:[%s7] sm:$0xff] %vm342, %v339
  // Predicated region
  $region30: #{tpu_custom_call.1} parent=0 // pred_check
    _
  $region31: #{tpu_custom_call.1} parent=0 // pred_check_branch
    %345 = sbr.rel (0) target = $region33
  $region32: #{tpu_custom_call.1} parent=0 // pred_region
    _
  $region33: #{tpu_custom_call.1} parent=0 // pred_fallthru
    _
  // Predicated region
  $region34: #{tpu_custom_call.1} parent=0 // pred_check
    _
  $region35: #{tpu_custom_call.1} parent=0 // pred_check_branch
    %347 = sbr.rel (0) target = $region37
  $region36: #{tpu_custom_call.1} parent=0 // pred_region
    _
  $region37: #{tpu_custom_call.1} parent=0 // pred_fallthru
    _

</llo_original>
